<compile_context>
chip_gen: v7x
topology: tpu7x:2x2x1
jax: 0.10.0
libtpu: 0.0.40
codegen_flags: <defaults>
</compile_context>

<pallas_src>
import jax
import jax.numpy as jnp
import numpy as np
from jax.experimental import pallas as pl
from jax.experimental.pallas import tpu as pltpu

_LANE = 128  # TPU vreg lane width


# ----------------------------- kernel ----------------------------------------

def linear_kernel(x_ref, wt_ref, b_ref, out_ref):
    # out = x @ W^T + b   (all operands fully resident in VMEM, one MXU push)
    out_ref[...] = (
        jnp.dot(x_ref[...], wt_ref[...], preferred_element_type=jnp.float32)
        + b_ref[...]
    )


# ----------------------------- wrapper ----------------------------------------

def make_classifier(weight, bias):
    """Build the Classifier forward with parameters preprocessed once.

    weight: (N, D) float32  (PyTorch nn.Linear layout: (out, in))
    bias:   (N,)   float32
    Returns a jitted `forward(x: (B, D)) -> (B, N)`.
    """
    weight = jnp.asarray(weight, jnp.float32)
    bias = jnp.asarray(bias, jnp.float32)
    N, D = weight.shape

    # Lane-dense output width: pad N up to a multiple of 128 so the kernel's
    # store is a full, unmasked vst.  Padding columns of W^T / b are zero, so
    # semantics are unchanged; the wrapper slices the pad off.
    n_pad = ((N + _LANE - 1) // _LANE) * _LANE

    # Precompute the transposed, zero-padded parameters ONCE (not per call).
    wt = jnp.zeros((D, n_pad), jnp.float32).at[:, :N].set(weight.T)
    b2 = jnp.zeros((1, n_pad), jnp.float32).at[:, :N].set(bias)
    wt = jax.device_put(wt)
    b2 = jax.device_put(b2)

    vmem = pltpu.MemorySpace.VMEM

    @jax.jit
    def forward(x):
        x = x.astype(jnp.float32)
        B = x.shape[0]
        out_padded = pl.pallas_call(
            linear_kernel,
            out_shape=jax.ShapeDtypeStruct((B, n_pad), jnp.float32),
            # No grid: single invocation, whole problem resident in VMEM,
            # no pipeline prologue/epilogue or double-buffer bookkeeping.
            in_specs=[
                pl.BlockSpec(memory_space=vmem),  # x  (B, D)
                pl.BlockSpec(memory_space=vmem),  # W^T (D, n_pad), precomputed
                pl.BlockSpec(memory_space=vmem),  # bias (1, n_pad), precomputed
            ],
            out_specs=pl.BlockSpec(memory_space=vmem),
        )(x, wt, b2)
        return out_padded[:, :N]

    return forward


# ------------------------- pure-JAX reference ---------------------------------

def classifier_ref(x, weight, bias):
    return x @ weight.T + bias


# --------------------------------- main ----------------------------------------

if __name__ == "__main__":
    # Small shapes consistent with the module (MLP-Mixer head):
    #   batch B = 2, input_dim D = 16, num_classes N = 10.
    B, D, N = 2, 16, 10

    key = jax.random.PRNGKey(0)
    k_x, k_b, k_w = jax.random.split(key, 3)

    x = jax.random.normal(k_x, (B, D), jnp.float32)

    # Module-faithful parameters: weight zero-initialized (nn.init.zeros_),
    # bias ~ U(-1/sqrt(D), 1/sqrt(D)) like PyTorch's nn.Linear default.
    bound = 1.0 / np.sqrt(D)
    weight_zero = jnp.zeros((N, D), jnp.float32)
    bias = jax.random.uniform(k_b, (N,), jnp.float32, -bound, bound)

    forward = make_classifier(weight_zero, bias)
    out = jax.block_until_ready(forward(x))
    ref = jax.block_until_ready(classifier_ref(x, weight_zero, bias))
    np.testing.assert_allclose(np.asarray(out), np.asarray(ref),
                               rtol=1e-5, atol=1e-5)

    # Extra check with a non-zero weight so the matmul path is actually
    # exercised (same forward semantics, just different parameter values).
    weight_rand = 0.1 * jax.random.normal(k_w, (N, D), jnp.float32)
    forward_rand = make_classifier(weight_rand, bias)
    out2 = jax.block_until_ready(forward_rand(x))
    ref2 = jax.block_until_ready(classifier_ref(x, weight_rand, bias))
    np.testing.assert_allclose(np.asarray(out2), np.asarray(ref2),
                               rtol=1e-5, atol=1e-5)

    print("KERNEL_OK")
</pallas_src>

<mosaic_0001>
module attributes {stable_mosaic.version = 11 : i64} {
  func.func @linear_kernel(%arg0: memref<2x16xf32, #tpu.memory_space<vmem>>, %arg1: memref<16x128xf32, #tpu.memory_space<vmem>>, %arg2: memref<1x128xf32, #tpu.memory_space<vmem>>, %arg3: memref<2x128xf32, #tpu.memory_space<vmem>>) attributes {dimension_semantics = [], scalar_prefetch = 0 : i64, scratch_operands = 0 : i64, tpu.core_type = #tpu.core_type<tc>} {
    %c0 = arith.constant 0 : index
    %c0_0 = arith.constant 0 : index
    %0 = vector.load %arg0[%c0, %c0_0] : memref<2x16xf32, #tpu.memory_space<vmem>>, vector<2x16xf32>
    %c0_1 = arith.constant 0 : index
    %c0_2 = arith.constant 0 : index
    %1 = vector.load %arg1[%c0_1, %c0_2] : memref<16x128xf32, #tpu.memory_space<vmem>>, vector<16x128xf32>
    %cst = arith.constant dense<0.000000e+00> : vector<2x128xf32>
    %2 = tpu.matmul %0, %1, %cst {dimension_numbers = #tpu.dot_dimension_numbers<[1], [0], [0], [1], [0, 0, 1, 1], [], []>} : vector<2x16xf32>, vector<16x128xf32>, vector<2x128xf32> -> vector<2x128xf32>
    %c0_3 = arith.constant 0 : index
    %c0_4 = arith.constant 0 : index
    %3 = vector.load %arg2[%c0_3, %c0_4] : memref<1x128xf32, #tpu.memory_space<vmem>>, vector<1x128xf32>
    %4 = vector.broadcast %3 : vector<1x128xf32> to vector<2x128xf32>
    %5 = arith.addf %2, %4 : vector<2x128xf32>
    %c0_5 = arith.constant 0 : index
    %c0_6 = arith.constant 0 : index
    %6 = vector.load %arg3[%c0_5, %c0_6] : memref<2x128xf32, #tpu.memory_space<vmem>>, vector<2x128xf32>
    tpu.vector_store %arg3[%c0_5, %c0_6], %5 {strides = array<i32>} : memref<2x128xf32, #tpu.memory_space<vmem>>, vector<2x128xf32>,
    return
  }
}

</mosaic_0001>

<llo_original>
// kernel: forward.1
$region0: #{forward.1}
  #allocation0 [shape = 'u32[]', space=smem, size = 0x4, offset = 0x4, fixed_abs, tag = 'smem constant byte address 0x4 - core index']
  #allocation1 [shape = 'u32[144,128]{1,0:T(1,128)}', space=vmem, size = 0x12000, scoped, tag = 'internal scratch']
  %s0 = inlined_call_operand.vmem [shape: f32[2,16], index: 0, kind: input, shape index: {}]
  %s1 = inlined_call_operand.vmem [shape: f32[16,128], index: 1, kind: input, shape index: {}]
  %s2 = inlined_call_operand.vmem [shape: f32[1,128], index: 2, kind: input, shape index: {}]
  %s3 = inlined_call_operand.hbm [shape: f32[2,128], index: 3, kind: output, shape index: {}]
  %s4 = sld [smem:[#allocation0]]
  $region22: #{forward.1} parent=0
    _
  %s6 = ssub.s32 1, %s4
  %s7 = scalar_select 0, %s6, %s4
  $region1: #{forward.1} parent=0
    #allocation2 [shape = 'u8[1024]{0}', space=vmem, size = 0x400, scoped, tag = 'output window, operand 0, single buffered']
    #allocation3 [shape = 's32[1]{0}', space=sflag, size = 0x4, scoped, tag = 'scoped memory for forward.1']
    %8 = vsyncpa [#allocation3], 0
    // Predicated region
    $region2: #{forward.1} parent=1 // pred_check
      _
    $region3: #{forward.1} parent=1 // pred_check_branch
      %10 = sbr.rel (0) target = $region5
    $region4: #{forward.1} parent=1 // pred_region
      _
    $region5: #{forward.1} parent=1 // pred_fallthru
      _
    // Predicated region
    $region6: #{forward.1} parent=1 // pred_check
      _
    $region7: #{forward.1} parent=1 // pred_check_branch
      %12 = sbr.rel (0) target = $region9
    $region8: #{forward.1} parent=1 // pred_region
      _
    $region9: #{forward.1} parent=1 // pred_fallthru
      _
    // Predicated region
    $region10: #{forward.1} parent=1 // pred_check
      _
    $region11: #{forward.1} parent=1 // pred_check_branch
      %14 = sbr.rel (0) target = $region13
    $region12: #{forward.1} parent=1 // pred_region
      _
    $region13: #{forward.1} parent=1 // pred_fallthru
      _
    %v15 = vld [vmem:[%s0] sm:$0x3]
    %v16 = vld [vmem:[%s1] sm:$0xff]
    %v17 = vld [vmem:[%s1 + $0x8] sm:$0xff]
    %v18 = vld [vmem:[%s2] sm:$0x1]
    %v20 = vlaneseq
    %v21 = vshrl.u32 %v20, 7
    %v22 = vsub.s32 0, %v21
    %v23 = vrot.slane %v18, %v22
    %vm25 = vcmask 130048
    %v27 = vsel %vm25, %v15, 0
    %29 = vmatprep.subr.mxu0 0.0
    %30 = vmatpush1.msra.mxu0 %v16
    %31 = vmatprep.subr.mxu0 0.0
    %32 = vmatpush1.msra.mxu0 %v17
    %33 = vmatprep.subr.mxu0 0.0
    %34 = vmatpush1.msra.mxu0 0.0
    %35 = vmatprep.subr.mxu0 0.0
    %36 = vmatpush1.msra.mxu0 0.0
    %37 = vmatprep.subr.mxu0 0.0
    %38 = vmatpush1.msra.mxu0 0.0
    %39 = vmatprep.subr.mxu0 0.0
    %40 = vmatpush1.msra.mxu0 0.0
    %41 = vmatprep.subr.mxu0 0.0
    %42 = vmatpush1.msra.mxu0 0.0
    %43 = vmatprep.subr.mxu0 0.0
    %44 = vmatpush1.msra.mxu0 0.0
    %45 = vmatprep.subr.mxu0 0.0
    %46 = vmatpush1.msra.mxu0 0.0
    %47 = vmatprep.subr.mxu0 0.0
    %48 = vmatpush1.msra.mxu0 0.0
    %49 = vmatprep.subr.mxu0 0.0
    %50 = vmatpush1.msra.mxu0 0.0
    %51 = vmatprep.subr.mxu0 0.0
    %52 = vmatpush1.msra.mxu0 0.0
    %53 = vmatprep.subr.mxu0 0.0
    %54 = vmatpush1.msra.mxu0 0.0
    %55 = vmatprep.subr.mxu0 0.0
    %56 = vmatpush1.msra.mxu0 0.0
    %57 = vmatprep.subr.mxu0 0.0
    %58 = vmatpush1.msra.mxu0 0.0
    %59 = vmatprep.subr.mxu0 0.0
    %60 = vmatpush1.msra.mxu0 0.0
    %61 = vmatprep.subr.mxu0 0.0
    %62 = vmatpush1.msra.mxu0 0.0
    %63 = vmatprep.subr.mxu0 0.0
    %64 = vmatpush1.msra.mxu0 0.0
    %65 = vmatprep.subr.mxu0 0.0
    %66 = vmatpush1.msra.mxu0 0.0
    %67 = vmatprep.subr.mxu0 0.0
    %68 = vmatpush1.msra.mxu0 0.0
    %69 = vmatprep.subr.mxu0 0.0
    %70 = vmatpush1.msra.mxu0 0.0
    %71 = vmatprep.subr.mxu0 0.0
    %72 = vmatpush1.msra.mxu0 0.0
    %73 = vmatprep.subr.mxu0 0.0
    %74 = vmatpush1.msra.mxu0 0.0
    %75 = vmatprep.subr.mxu0 0.0
    %76 = vmatpush1.msra.mxu0 0.0
    %77 = vmatprep.subr.mxu0 0.0
    %78 = vmatpush1.msra.mxu0 0.0
    %79 = vmatprep.subr.mxu0 0.0
    %80 = vmatpush1.msra.mxu0 0.0
    %81 = vmatprep.subr.mxu0 0.0
    %82 = vmatpush1.msra.mxu0 0.0
    %83 = vmatprep.subr.mxu0 0.0
    %84 = vmatpush1.msra.mxu0 0.0
    %85 = vmatprep.subr.mxu0 0.0
    %86 = vmatpush1.msra.mxu0 0.0
    %87 = vmatprep.subr.mxu0 0.0
    %88 = vmatpush1.msra.mxu0 0.0
    %89 = vmatprep.subr.mxu0 0.0
    %90 = vmatpush1.msra.mxu0 0.0
    %91 = vmatprep.subr.mxu0 0.0
    %92 = vmatpush1.msra.mxu0 0.0
    %93 = vmatprep.mubr.f32.mxu0 0.0
    %94 = vmatmul.mubr.f32.gmra.mrb[0].mxu0 %v27
    %v95 = vpop.f32.mrb[0].mxu0
    %v96 = vadd.f32 %v23, %v95
    %v97 = vpop.f32.mrb[0].mxu0
    %98 = vdwg.mxu0
    %99 = vst [vmem:[#allocation2] sm:$0x3] %v96
    // Predicated region
    $region14: #{forward.1} parent=1 // pred_check
      _
    $region15: #{forward.1} parent=1 // pred_check_branch
      %101 = sbr.rel (0) target = $region17
    $region16: #{forward.1} parent=1 // pred_region
      %s103 = ssub.s32 32, 32
      %104 = vsyncadd [#allocation3], %s103
      %s106 = sshll.u32 [#allocation2], 4
      %s107 = int_to_ptr.vmem [resolvable:$true] %s106
      %109 = dma.vmem_to_hbm [thread:$0]  %s107, 32, %s3, [#allocation3]
    $region17: #{forward.1} parent=1 // pred_fallthru
      _
    // Predicated region
    $region18: #{forward.1} parent=1 // pred_check
      _
    $region19: #{forward.1} parent=1 // pred_check_branch
      %111 = sbr.rel (0) target = $region21
    $region20: #{forward.1} parent=1 // pred_region
      %112 = dma.done [#allocation3], 32
    $region21: #{forward.1} parent=1 // pred_fallthru
      _
    %113 = vsyncpa [#allocation3], 1

</llo_original>
